<compile_context>
chip_gen: v7x
topology: tpu7x:2x2x1
jax: 0.10.0
libtpu: 0.0.40
codegen_flags: <defaults>
</compile_context>

<pallas_src>
import jax
import jax.numpy as jnp
from jax import lax
from jax.experimental import pallas as pl
from jax.experimental.pallas import tpu as pltpu


# ----------------------------------------------------------------------------
# Kernel
# ----------------------------------------------------------------------------
def _distill_kernel(aux_idx_ref,   # scalar-prefetch (used only in index_maps)
                    res_ref,       # (1, C, bm)    residual features_t tile
                    patches_ref,   # (1, 9C, bm)   im2col of features_a tile
                    w_att_ref,     # (1, 1, C, 9C) attention conv weight (t, a)
                    w_conv_ref,    # (1, 1, C, 9C) feature conv weight (t, a)
                    out_ref,       # (1, C, bm)
                    acc_ref):      # (C, bm) f32 scratch accumulator
    del aux_idx_ref
    k = pl.program_id(2)

    @pl.when(k == 0)
    def _init():
        acc_ref[...] = res_ref[0].astype(jnp.float32)

    patches = patches_ref[0]                                    # (9C, bm)
    att = jnp.dot(w_att_ref[0, 0], patches,
                  preferred_element_type=jnp.float32)           # (C, bm)
    fea = jnp.dot(w_conv_ref[0, 0], patches,
                  preferred_element_type=jnp.float32)           # (C, bm)
    # sigmoid(att): exp on the EUP, approx reciprocal also on the EUP slot.
    gate = pl.reciprocal(1.0 + jnp.exp(-att), approx=True)
    acc_ref[...] += gate * fea

    @pl.when(k == pl.num_programs(2) - 1)
    def _store():
        out_ref[0] = acc_ref[...].astype(out_ref.dtype)


# ----------------------------------------------------------------------------
# Wrapper-side layout plumbing
# ----------------------------------------------------------------------------
def _im2col_3x3(x_nchw):
    """(N, C, H, W) -> (9*C, N*H*W) patches for a 3x3 / pad=1 conv.

    Row order is (dy*3 + dx)*C + ci, matching weights flattened with _w2d.
    Columns are lane-dense: column = n*H*W + y*W + x.
    """
    n, c, h, w = x_nchw.shape
    xp = jnp.pad(x_nchw, ((0, 0), (0, 0), (1, 1), (1, 1)))
    slabs = []
    for dy in range(3):
        for dx in range(3):
            s = xp[:, :, dy:dy + h, dx:dx + w]                  # (N, C, H, W)
            slabs.append(jnp.transpose(s, (1, 0, 2, 3)).reshape(c, n * h * w))
    return jnp.concatenate(slabs, axis=0)                       # (9C, NHW)


def _w2d(w_oihw):
    """Torch Conv2d weight (C_out, C_in, 3, 3) -> (C_out, 9*C_in)."""
    co, ci, kh, kw = w_oihw.shape
    return jnp.transpose(w_oihw, (0, 2, 3, 1)).reshape(co, kh * kw * ci)


def _pick_block_m(nhw, bytes_per_col, target_bytes=2 << 20):
    """Largest lane-dense (multiple of 128) tile of the NHW axis whose im2col
    slab stays near target_bytes (tiles are double-buffered by the pipeline)."""
    target = max(128, min(nhw, target_bytes // max(1, bytes_per_col)))
    if nhw <= target:
        return nhw
    bm = (target // 128) * 128
    while bm >= 128:
        if nhw % bm == 0:
            return bm
        bm -= 128
    return nhw   # no lane-aligned divisor: single (bigger) tile, still correct


def distillation_pallas(x, weights, tasks, auxilary_tasks):
    """Pallas port of Distillation.forward.

    x:       {'features_<a>': (N, C, H, W)} for every auxiliary/primary task.
    weights: weights[t][a] = {'att': (C, C, 3, 3), 'conv': (C, C, 3, 3)}
             (torch Conv2d OIHW layout, bias-free) for every t and a != t.
    returns: {t: (N, C, H, W)}
    """
    others = {t: [a for a in auxilary_tasks if a != t] for t in tasks}
    counts = {len(v) for v in others.values()}
    assert len(counts) == 1 and min(counts) >= 1, (
        "fused kernel expects every task to have the same (>=1) number of "
        "other auxiliary tasks")
    K = counts.pop()
    T = len(tasks)

    ref0 = x['features_%s' % tasks[0]]
    N, C, H, W = ref0.shape
    NHW = N * H * W
    dtype = ref0.dtype

    # TODO(synk): for large C/H/W, do the 3x3 shift-slicing inside the kernel
    # instead of wrapper-side im2col, to avoid the 9x HBM expansion of inputs.
    patches_all = jnp.stack(
        [_im2col_3x3(x['features_%s' % a]) for a in auxilary_tasks], axis=0
    )                                                           # (A, 9C, NHW)
    res_all = jnp.stack(
        [jnp.transpose(x['features_%s' % t], (1, 0, 2, 3)).reshape(C, NHW)
         for t in tasks], axis=0)                               # (T, C, NHW)
    w_att_all = jnp.stack(
        [jnp.stack([_w2d(weights[t][a]['att']) for a in others[t]], axis=0)
         for t in tasks], axis=0)                               # (T, K, C, 9C)
    w_conv_all = jnp.stack(
        [jnp.stack([_w2d(weights[t][a]['conv']) for a in others[t]], axis=0)
         for t in tasks], axis=0)                               # (T, K, C, 9C)
    aux_idx = jnp.asarray(
        [[auxilary_tasks.index(a) for a in others[t]] for t in tasks],
        dtype=jnp.int32)                                        # (T, K)

    bm = _pick_block_m(NHW, bytes_per_col=9 * C * patches_all.dtype.itemsize)
    grid = (T, NHW // bm, K)

    out = pl.pallas_call(
        _distill_kernel,
        out_shape=jax.ShapeDtypeStruct((T, C, NHW), dtype),
        grid_spec=pltpu.PrefetchScalarGridSpec(
            num_scalar_prefetch=1,
            grid=grid,
            in_specs=[
                pl.BlockSpec((1, C, bm),
                             lambda t, m, k, aidx: (t, 0, m)),          # residual
                pl.BlockSpec((1, 9 * C, bm),
                             lambda t, m, k, aidx: (aidx[t, k], 0, m)),  # patches
                pl.BlockSpec((1, 1, C, 9 * C),
                             lambda t, m, k, aidx: (t, k, 0, 0)),        # w_att
                pl.BlockSpec((1, 1, C, 9 * C),
                             lambda t, m, k, aidx: (t, k, 0, 0)),        # w_conv
            ],
            out_specs=pl.BlockSpec((1, C, bm),
                                   lambda t, m, k, aidx: (t, 0, m)),
            scratch_shapes=[pltpu.VMEM((C, bm), jnp.float32)],
        ),
        compiler_params=pltpu.CompilerParams(
            dimension_semantics=("parallel", "parallel", "arbitrary"),
        ),
    )(aux_idx, res_all, patches_all, w_att_all, w_conv_all)

    out = out.reshape(T, C, N, H, W).transpose(0, 2, 1, 3, 4)   # (T, N, C, H, W)
    return {t: out[i] for i, t in enumerate(tasks)}


# ----------------------------------------------------------------------------
# Pure-JAX reference (mirrors the PyTorch module)
# ----------------------------------------------------------------------------
def _conv3x3_ref(x, w):
    return lax.conv_general_dilated(
        x, w, window_strides=(1, 1), padding=((1, 1), (1, 1)),
        dimension_numbers=('NCHW', 'OIHW', 'NCHW'),
        precision=lax.Precision.HIGHEST)


def distillation_ref(x, weights, tasks, auxilary_tasks):
    out = {}
    for t in tasks:
        acc = x['features_%s' % t].astype(jnp.float32)
        for a in auxilary_tasks:
            if a == t:
                continue
            att = jax.nn.sigmoid(_conv3x3_ref(x['features_%s' % a],
                                              weights[t][a]['att']))
            fea = _conv3x3_ref(x['features_%s' % a], weights[t][a]['conv'])
            acc = acc + att * fea
        out[t] = acc.astype(x['features_%s' % t].dtype)
    return out


if __name__ == "__main__":
    tasks = ["semseg", "depth", "normals"]
    auxilary_tasks = ["semseg", "depth", "normals"]
    channels, batch, H, W = 4, 2, 16, 16

    key = jax.random.PRNGKey(0)
    k_feat, k_w = jax.random.split(key)

    feat_keys = jax.random.split(k_feat, len(auxilary_tasks))
    x = {'features_%s' % a: jax.random.normal(
            feat_keys[i], (batch, channels, H, W), dtype=jnp.float32)
         for i, a in enumerate(auxilary_tasks)}

    weights = {}
    wk = k_w
    for t in tasks:
        weights[t] = {}
        for a in auxilary_tasks:
            if a == t:
                continue
            wk, k1, k2 = jax.random.split(wk, 3)
            weights[t][a] = {
                'att': 0.1 * jax.random.normal(
                    k1, (channels, channels, 3, 3), dtype=jnp.float32),
                'conv': 0.1 * jax.random.normal(
                    k2, (channels, channels, 3, 3), dtype=jnp.float32),
            }

    out = distillation_pallas(x, weights, tasks, auxilary_tasks)
    out = jax.block_until_ready(out)

    ref = distillation_ref(x, weights, tasks, auxilary_tasks)
    for t in tasks:
        # tolerance accounts for the approx (EUP) reciprocal in the sigmoid
        assert jnp.allclose(out[t], ref[t], atol=5e-3, rtol=5e-3), (
            "mismatch vs reference for task %s" % t)

    print("KERNEL_OK")
</pallas_src>

<mosaic_0001>
module attributes {stable_mosaic.version = 11 : i64} {
  func.func @_distill_kernel(%arg0: i32, %arg1: i32, %arg2: i32, %arg3: memref<3x2xi32, #tpu.memory_space<smem>>, %arg4: memref<1x4x512xf32, #tpu.memory_space<vmem>>, %arg5: memref<1x36x512xf32, #tpu.memory_space<vmem>>, %arg6: memref<1x1x4x36xf32, #tpu.memory_space<vmem>>, %arg7: memref<1x1x4x36xf32, #tpu.memory_space<vmem>>, %arg8: memref<1x4x512xf32, #tpu.memory_space<vmem>>, %arg9: memref<4x512xf32, #tpu.memory_space<vmem>>) attributes {dimension_semantics = [#tpu.dimension_semantics<parallel>, #tpu.dimension_semantics<parallel>, #tpu.dimension_semantics<arbitrary>], iteration_bounds = array<i64: 3, 1, 2>, scalar_prefetch = 1 : i64, scratch_operands = 1 : i64, tpu.core_type = #tpu.core_type<tc>, window_params = [{transform_indices = @transform_0, window_bounds = array<i64: 1, 4, 512>}, {transform_indices = @transform_1, window_bounds = array<i64: 1, 36, 512>}, {transform_indices = @transform_2, window_bounds = array<i64: 1, 1, 4, 36>}, {transform_indices = @transform_3, window_bounds = array<i64: 1, 1, 4, 36>}, {transform_indices = @transform_4, window_bounds = array<i64: 1, 4, 512>}]} {
    %c0_i32 = arith.constant 0 : i32
    %0 = arith.cmpi eq, %arg2, %c0_i32 : i32
    %1 = arith.extui %0 : i1 to i32
    %c0_i32_0 = arith.constant 0 : i32
    %2 = arith.cmpi ne, %1, %c0_i32_0 : i32
    scf.if %2 {
      %c0_19 = arith.constant 0 : index
      %c0_20 = arith.constant 0 : index
      %c0_21 = arith.constant 0 : index
      %24 = vector.load %arg4[%c0_19, %c0_20, %c0_21] : memref<1x4x512xf32, #tpu.memory_space<vmem>>, vector<1x4x512xf32>
      %25 = vector.shape_cast %24 : vector<1x4x512xf32> to vector<4x512xf32>
      %c0_22 = arith.constant 0 : index
      %c0_23 = arith.constant 0 : index
      %26 = vector.load %arg9[%c0_22, %c0_23] : memref<4x512xf32, #tpu.memory_space<vmem>>, vector<4x512xf32>
      tpu.vector_store %arg9[%c0_22, %c0_23], %25 {strides = array<i32>} : memref<4x512xf32, #tpu.memory_space<vmem>>, vector<4x512xf32>,
    } else {
    }
    %c0 = arith.constant 0 : index
    %c0_1 = arith.constant 0 : index
    %c0_2 = arith.constant 0 : index
    %3 = vector.load %arg5[%c0, %c0_1, %c0_2] : memref<1x36x512xf32, #tpu.memory_space<vmem>>, vector<1x36x512xf32>
    %4 = vector.shape_cast %3 : vector<1x36x512xf32> to vector<36x512xf32>
    %c0_3 = arith.constant 0 : index
    %c0_4 = arith.constant 0 : index
    %c0_5 = arith.constant 0 : index
    %c0_6 = arith.constant 0 : index
    %5 = vector.load %arg6[%c0_3, %c0_4, %c0_5, %c0_6] : memref<1x1x4x36xf32, #tpu.memory_space<vmem>>, vector<1x1x4x36xf32>
    %6 = vector.shape_cast %5 : vector<1x1x4x36xf32> to vector<4x36xf32>
    %cst = arith.constant dense<0.000000e+00> : vector<4x512xf32>
    %7 = tpu.matmul %6, %4, %cst {dimension_numbers = #tpu.dot_dimension_numbers<[1], [0], [0], [1], [0, 0, 1, 1], [], []>} : vector<4x36xf32>, vector<36x512xf32>, vector<4x512xf32> -> vector<4x512xf32>
    %c0_7 = arith.constant 0 : index
    %c0_8 = arith.constant 0 : index
    %c0_9 = arith.constant 0 : index
    %c0_10 = arith.constant 0 : index
    %8 = vector.load %arg7[%c0_7, %c0_8, %c0_9, %c0_10] : memref<1x1x4x36xf32, #tpu.memory_space<vmem>>, vector<1x1x4x36xf32>
    %9 = vector.shape_cast %8 : vector<1x1x4x36xf32> to vector<4x36xf32>
    %cst_11 = arith.constant dense<0.000000e+00> : vector<4x512xf32>
    %10 = tpu.matmul %9, %4, %cst_11 {dimension_numbers = #tpu.dot_dimension_numbers<[1], [0], [0], [1], [0, 0, 1, 1], [], []>} : vector<4x36xf32>, vector<36x512xf32>, vector<4x512xf32> -> vector<4x512xf32>
    %cst_12 = arith.constant 0.000000e+00 : f32
    %11 = vector.broadcast %cst_12 : f32 to vector<4x512xf32>
    %12 = arith.subf %11, %7 : vector<4x512xf32>
    %13 = math.exp %12 : vector<4x512xf32>
    %cst_13 = arith.constant 1.000000e+00 : f32
    %14 = vector.broadcast %cst_13 : f32 to vector<4x512xf32>
    %15 = arith.addf %14, %13 : vector<4x512xf32>
    %16 = tpu.reciprocal %15 {approx = true} : vector<4x512xf32> -> vector<4x512xf32>
    %c0_14 = arith.constant 0 : index
    %c0_15 = arith.constant 0 : index
    %17 = vector.load %arg9[%c0_14, %c0_15] : memref<4x512xf32, #tpu.memory_space<vmem>>, vector<4x512xf32>
    %18 = arith.mulf %16, %10 : vector<4x512xf32>
    %19 = arith.addf %17, %18 : vector<4x512xf32>
    %c0_16 = arith.constant 0 : index
    %c0_17 = arith.constant 0 : index
    %20 = vector.load %arg9[%c0_16, %c0_17] : memref<4x512xf32, #tpu.memory_space<vmem>>, vector<4x512xf32>
    tpu.vector_store %arg9[%c0_16, %c0_17], %19 {strides = array<i32>} : memref<4x512xf32, #tpu.memory_space<vmem>>, vector<4x512xf32>,
    %c1_i32 = arith.constant 1 : i32
    %21 = arith.cmpi eq, %arg2, %c1_i32 : i32
    %22 = arith.extui %21 : i1 to i32
    %c0_i32_18 = arith.constant 0 : i32
    %23 = arith.cmpi ne, %22, %c0_i32_18 : i32
    scf.if %23 {
      %c0_19 = arith.constant 0 : index
      %c0_20 = arith.constant 0 : index
      %24 = vector.load %arg9[%c0_19, %c0_20] : memref<4x512xf32, #tpu.memory_space<vmem>>, vector<4x512xf32>
      %c0_21 = arith.constant 0 : index
      %c0_22 = arith.constant 0 : index
      %c0_23 = arith.constant 0 : index
      %25 = vector.load %arg8[%c0_21, %c0_22, %c0_23] : memref<1x4x512xf32, #tpu.memory_space<vmem>>, vector<1x4x512xf32>
      %26 = vector.shape_cast %25 : vector<1x4x512xf32> to vector<4x512xf32>
      %27 = vector.shape_cast %24 : vector<4x512xf32> to vector<1x4x512xf32>
      tpu.vector_store %arg8[%c0_21, %c0_22, %c0_23], %27 {strides = array<i32>} : memref<1x4x512xf32, #tpu.memory_space<vmem>>, vector<1x4x512xf32>,
    } else {
    }
    return
  }
  func.func @transform_0(%arg0: i32, %arg1: i32, %arg2: i32, %arg3: memref<3x2xi32, #tpu.memory_space<smem>>) -> (i32, i32, i32) {
    %c0_i32 = arith.constant 0 : i32
    %c0_i32_0 = arith.constant 0 : i32
    return %arg0, %c0_i32, %arg1 : i32, i32, i32
  }
  func.func @transform_1(%arg0: i32, %arg1: i32, %arg2: i32, %arg3: memref<3x2xi32, #tpu.memory_space<smem>>) -> (i32, i32, i32) {
    %0 = arith.index_cast %arg0 : i32 to index
    %1 = arith.index_cast %arg2 : i32 to index
    %2 = memref.load %arg3[%0, %1] : memref<3x2xi32, #tpu.memory_space<smem>>
    %c0_i32 = arith.constant 0 : i32
    %c0_i32_0 = arith.constant 0 : i32
    return %2, %c0_i32, %arg1 : i32, i32, i32
  }
  func.func @transform_2(%arg0: i32, %arg1: i32, %arg2: i32, %arg3: memref<3x2xi32, #tpu.memory_space<smem>>) -> (i32, i32, i32, i32) {
    %c0_i32 = arith.constant 0 : i32
    %c0_i32_0 = arith.constant 0 : i32
    %c0_i32_1 = arith.constant 0 : i32
    return %arg0, %arg2, %c0_i32, %c0_i32_0 : i32, i32, i32, i32
  }
  func.func @transform_3(%arg0: i32, %arg1: i32, %arg2: i32, %arg3: memref<3x2xi32, #tpu.memory_space<smem>>) -> (i32, i32, i32, i32) {
    %c0_i32 = arith.constant 0 : i32
    %c0_i32_0 = arith.constant 0 : i32
    %c0_i32_1 = arith.constant 0 : i32
    return %arg0, %arg2, %c0_i32, %c0_i32_0 : i32, i32, i32, i32
  }
  func.func @transform_4(%arg0: i32, %arg1: i32, %arg2: i32, %arg3: memref<3x2xi32, #tpu.memory_space<smem>>) -> (i32, i32, i32) {
    %c0_i32 = arith.constant 0 : i32
    %c0_i32_0 = arith.constant 0 : i32
    return %arg0, %c0_i32, %arg1 : i32, i32, i32
  }
}

</mosaic_0001>

<llo_original>
// kernel: tpu_custom_call.1
$region0: #{tpu_custom_call.1}
  #allocation0 [shape = 'u32[]', space=smem, size = 0x4, offset = 0x4, fixed_abs, tag = 'smem constant byte address 0x4 - core index']
  #allocation1 [shape = 'u32[144,128]{1,0:T(1,128)}', space=vmem, size = 0x12000, scoped, tag = 'internal scratch']
  #allocation2 [shape = 'f32[4,512]{1,0:T(4,128)}', space=vmem, size = 0x2000, scoped, tag = 'scratch operand']
  #allocation3 [shape = 's32[1]{0}', space=sflag, size = 0x4, scoped, tag = 'scoped memory for tpu_custom_call.1']
  #allocation4 [shape = 'u8[2048]{0}', space=smem, size = 0x800, scoped, tag = 'prefetched SMEM operand 0']
  %s0 = inlined_call_operand.vmem [shape: s32[3,2], index: 0, kind: input, shape index: {}]
  %s1 = inlined_call_operand.hbm [shape: f32[3,4,512], index: 1, kind: input, shape index: {}]
  %s2 = inlined_call_operand.hbm [shape: f32[3,36,512], index: 2, kind: input, shape index: {}]
  %s3 = inlined_call_operand.hbm [shape: f32[3,2,4,36], index: 3, kind: input, shape index: {}]
  %s4 = inlined_call_operand.hbm [shape: f32[3,2,4,36], index: 4, kind: input, shape index: {}]
  %s5 = inlined_call_operand.hbm [shape: f32[3,4,512], index: 5, kind: output, shape index: {}]
  %s6 = sld [smem:[#allocation0]]
  $region73: #{tpu_custom_call.1} parent=0
    _
  %s8 = ssub.s32 1, %s6
  %s9 = scalar_select 0, %s8, %s6
  %s10 = sshll.u32 %s0, 4
  %s11 = int_to_ptr.vmem [resolvable:$true] %s10
  %13 = dma.vmem_to_smem %s11, 64, [#allocation4], [#allocation3]
  %14 = dma.done [#allocation3], 64
  %15 = sfence
  $region1: #{tpu_custom_call.1} parent=0
    #allocation5 [shape = 'u8[16384]{0}', space=vmem, size = 0x4000, scoped, tag = 'input window, operand 1']
    #allocation6 [shape = 's32[2]{0}', space=sflag, size = 0x8, scoped, tag = 'scoped memory for tpu_custom_call.1']
    #allocation7 [shape = 's32[2]{0}', space=sflag, size = 0x8, scoped, tag = 'scoped memory for tpu_custom_call.1']
    #allocation8 [shape = 'u8[163840]{0}', space=vmem, size = 0x28000, scoped, tag = 'input window, operand 2']
    #allocation9 [shape = 's32[2]{0}', space=sflag, size = 0x8, scoped, tag = 'scoped memory for tpu_custom_call.1']
    #allocation10 [shape = 'u8[4096]{0}', space=vmem, size = 0x1000, scoped, tag = 'input window, operand 3']
    #allocation11 [shape = 'u8[4096]{0}', space=vmem, size = 0x1000, scoped, tag = 'input window, operand 4']
    #allocation12 [shape = 's32[2]{0}', space=sflag, size = 0x8, scoped, tag = 'scoped memory for tpu_custom_call.1']
    #allocation13 [shape = 'u8[16384]{0}', space=vmem, size = 0x4000, scoped, tag = 'output window, operand 0']
    %16 = vsyncpa [#allocation6], 0
    %s17 = scalar_lea.sflag [#allocation6], 1
    %18 = vsyncpa %s17, 0
    %19 = vsyncpa [#allocation9], 0
    %s20 = scalar_lea.sflag [#allocation9], 1
    %21 = vsyncpa %s20, 0
    %22 = vsyncpa [#allocation12], 0
    %s23 = scalar_lea.sflag [#allocation12], 1
    %24 = vsyncpa %s23, 0
    %25 = vsyncpa [#allocation7], 0
    %s26 = scalar_lea.sflag [#allocation7], 1
    %27 = vsyncpa %s26, 0
    loop: start=0, step=1, limit=8
    $region2: #{tpu_custom_call.1} parent=1 // loop_pre_header
      _
    $region3: #{tpu_custom_call.1} parent=1 // loop_header
      %s29 = sphi 0, %s33
      %p30 = scmp.ge.s32.totalorder %s29, 8
      %s36 = sphi 0, %s55
      %s37 = sphi 0, %s51
      %s38 = sphi 0, %s47
      %s39 = sphi 0, %s36
      %s40 = sphi 0, %s37
      %s41 = sphi 0, %s38
      %s42 = sphi 0, %s39
      %s43 = sphi 0, %s40
      %s44 = sphi 0, %s41
      %s60 = sphi 0, %s62
      %s63 = sphi 0, %s60
      %s64 = sphi 0, %s63
      %s80 = sphi 0, %s64
      %s104 = sphi 0, %s106
      %s107 = sphi 0, %s104
      %s108 = sphi 0, %s107
      %s124 = sphi 0, %s108
      %s132 = sphi 0, %s134
      %s135 = sphi 0, %s132
      %s136 = sphi 0, %s135
      %s152 = sphi 0, %s136
      %s160 = sphi 0, %s162
      %s163 = sphi 0, %s160
      %s164 = sphi 0, %s163
      %s180 = sphi 0, %s164
      %s188 = sphi 0, %s190
      %s191 = sphi 0, %s188
      %s192 = sphi 0, %s191
      %s208 = sphi 0, %s192
    $region4: #{tpu_custom_call.1} parent=1 // loop_header_branch
      %32 = sbr.rel (%p30) target = $region8
    $region5: #{tpu_custom_call.1} parent=1 // loop_body
      %s34 = ssub.s32 %s29, 1
      %s35 = ssub.s32 %s29, 2
      %s45 = sadd.s32 1, %s38
      %p46 = scmp.ge.s32.totalorder %s45, 2
      %s47 = scalar_select %p46, 0, %s45
      %s48 = sadd.s32 1, %s37
      %s49 = scalar_select %p46, %s48, %s37
      %p50 = scmp.ge.s32.totalorder %s49, 1
      %s51 = scalar_select %p50, 0, %s49
      %s52 = sadd.s32 1, %s36
      %s53 = scalar_select %p50, %s52, %s36
      %p54 = scmp.ge.s32.totalorder %s53, 3
      %s55 = scalar_select %p54, 0, %s53
      %s56 = ssub.s32 %s36, %s55
      %s57 = ssub.s32 %s37, %s51
      %s58 = sor.u32 %s56, %s57
      %p59 = scmp.eq.s32.totalorder %s58, 0
      %s61 = sadd.s32 %s60, 1
      %s62 = scalar_select %p59, %s60, %s61
      %p65 = pneg %p59
      %p66 = scmp.eq.s32.totalorder %s29, 5
      %p67 = por %p65, %p66
      %p68 = scmp.ne.s32.totalorder %s60, %s63
      %p69 = scmp.eq.s32.totalorder %s29, 0
      %p70 = por %p68, %p69
      %p71 = scmp.ne.s32.totalorder %s60, %s63
      %p72 = scmp.eq.s32.totalorder %s34, 5
      %p73 = por %p71, %p72
      %p74 = scmp.ne.s32.totalorder %s63, %s64
      %p75 = scmp.eq.s32.totalorder %s34, 0
      %p76 = por %p74, %p75
      %p77 = scmp.ne.s32.totalorder %s63, %s64
      %p78 = scmp.eq.s32.totalorder %s35, 5
      %p79 = por %p77, %p78
      %p81 = scmp.ne.s32.totalorder %s64, %s80
      %p82 = scmp.eq.s32.totalorder %s35, 0
      %p83 = por %p81, %p82
      %s84 = sshra.s32 %s38, 7
      %s85 = sand.u32 %s38, 127
      %s86 = sadd.s32 %s84, %s36
      %s87 = smul.u32 %s86, 128
      %s88 = sshra.s32 %s38, 7
      %s89 = sand.u32 %s38, 127
      %s90 = sadd.s32 %s87, %s89
      %s91 = sld [smem:[#allocation4 + %s90]]
      %s92 = sshra.s32 %s47, 7
      %s93 = sand.u32 %s47, 127
      %s94 = sadd.s32 %s92, %s55
      %s95 = smul.u32 %s94, 128
      %s96 = sshra.s32 %s47, 7
      %s97 = sand.u32 %s47, 127
      %s98 = sadd.s32 %s95, %s97
      %s99 = sld [smem:[#allocation4 + %s98]]
      %s100 = ssub.s32 %s91, %s99
      %s101 = ssub.s32 %s37, %s51
      %s102 = sor.u32 %s100, %s101
      %p103 = scmp.eq.s32.totalorder %s102, 0
      %s105 = sadd.s32 %s104, 1
      %s106 = scalar_select %p103, %s104, %s105
      %p109 = pneg %p103
      %p110 = scmp.eq.s32.totalorder %s29, 5
      %p111 = por %p109, %p110
      %p112 = scmp.ne.s32.totalorder %s104, %s107
      %p113 = scmp.eq.s32.totalorder %s29, 0
      %p114 = por %p112, %p113
      %p115 = scmp.ne.s32.totalorder %s104, %s107
      %p116 = scmp.eq.s32.totalorder %s34, 5
      %p117 = por %p115, %p116
      %p118 = scmp.ne.s32.totalorder %s107, %s108
      %p119 = scmp.eq.s32.totalorder %s34, 0
      %p120 = por %p118, %p119
      %p121 = scmp.ne.s32.totalorder %s107, %s108
      %p122 = scmp.eq.s32.totalorder %s35, 5
      %p123 = por %p121, %p122
      %p125 = scmp.ne.s32.totalorder %s108, %s124
      %p126 = scmp.eq.s32.totalorder %s35, 0
      %p127 = por %p125, %p126
      %s128 = ssub.s32 %s36, %s55
      %s129 = ssub.s32 %s38, %s47
      %s130 = sor.u32 %s128, %s129
      %p131 = scmp.eq.s32.totalorder %s130, 0
      %s133 = sadd.s32 %s132, 1
      %s134 = scalar_select %p131, %s132, %s133
      %p137 = pneg %p131
      %p138 = scmp.eq.s32.totalorder %s29, 5
      %p139 = por %p137, %p138
      %p140 = scmp.ne.s32.totalorder %s132, %s135
      %p141 = scmp.eq.s32.totalorder %s29, 0
      %p142 = por %p140, %p141
      %p143 = scmp.ne.s32.totalorder %s132, %s135
      %p144 = scmp.eq.s32.totalorder %s34, 5
      %p145 = por %p143, %p144
      %p146 = scmp.ne.s32.totalorder %s135, %s136
      %p147 = scmp.eq.s32.totalorder %s34, 0
      %p148 = por %p146, %p147
      %p149 = scmp.ne.s32.totalorder %s135, %s136
      %p150 = scmp.eq.s32.totalorder %s35, 5
      %p151 = por %p149, %p150
      %p153 = scmp.ne.s32.totalorder %s136, %s152
      %p154 = scmp.eq.s32.totalorder %s35, 0
      %p155 = por %p153, %p154
      %s156 = ssub.s32 %s36, %s55
      %s157 = ssub.s32 %s38, %s47
      %s158 = sor.u32 %s156, %s157
      %p159 = scmp.eq.s32.totalorder %s158, 0
      %s161 = sadd.s32 %s160, 1
      %s162 = scalar_select %p159, %s160, %s161
      %p165 = pneg %p159
      %p166 = scmp.eq.s32.totalorder %s29, 5
      %p167 = por %p165, %p166
      %p168 = scmp.ne.s32.totalorder %s160, %s163
      %p169 = scmp.eq.s32.totalorder %s29, 0
      %p170 = por %p168, %p169
      %p171 = scmp.ne.s32.totalorder %s160, %s163
      %p172 = scmp.eq.s32.totalorder %s34, 5
      %p173 = por %p171, %p172
      %p174 = scmp.ne.s32.totalorder %s163, %s164
      %p175 = scmp.eq.s32.totalorder %s34, 0
      %p176 = por %p174, %p175
      %p177 = scmp.ne.s32.totalorder %s163, %s164
      %p178 = scmp.eq.s32.totalorder %s35, 5
      %p179 = por %p177, %p178
      %p181 = scmp.ne.s32.totalorder %s164, %s180
      %p182 = scmp.eq.s32.totalorder %s35, 0
      %p183 = por %p181, %p182
      %s184 = ssub.s32 %s36, %s55
      %s185 = ssub.s32 %s37, %s51
      %s186 = sor.u32 %s184, %s185
      %p187 = scmp.eq.s32.totalorder %s186, 0
      %s189 = sadd.s32 %s188, 1
      %s190 = scalar_select %p187, %s188, %s189
      %p193 = pneg %p187
      %p194 = scmp.eq.s32.totalorder %s29, 5
      %p195 = por %p193, %p194
      %p196 = scmp.ne.s32.totalorder %s188, %s191
      %p197 = scmp.eq.s32.totalorder %s29, 0
      %p198 = por %p196, %p197
      %p199 = scmp.ne.s32.totalorder %s188, %s191
      %p200 = scmp.eq.s32.totalorder %s34, 5
      %p201 = por %p199, %p200
      %p202 = scmp.ne.s32.totalorder %s191, %s192
      %p203 = scmp.eq.s32.totalorder %s34, 0
      %p204 = por %p202, %p203
      %p205 = scmp.ne.s32.totalorder %s191, %s192
      %p206 = scmp.eq.s32.totalorder %s35, 5
      %p207 = por %p205, %p206
      %p209 = scmp.ne.s32.totalorder %s192, %s208
      %p210 = scmp.eq.s32.totalorder %s35, 0
      %p211 = por %p209, %p210
      %p212 = scmp.le.s32.totalorder 1, %s29
      %p213 = scmp.lt.s32.totalorder %s29, 7
      %p214 = pnand %p212, %p213
      %p215 = pneg %p214
      // Predicated region
      $region9: #{tpu_custom_call.1} parent=5 // pred_check
        _
      $region10: #{tpu_custom_call.1} parent=5 // pred_check_branch
        %217 = sbr.rel (%p214) target = $region12
      $region11: #{tpu_custom_call.1} parent=5 // pred_region
        %s218 = ssub.s32 %s29, 1
      $region12: #{tpu_custom_call.1} parent=5 // pred_fallthru
        _
      %p219 = scmp.lt.s32.totalorder %s29, 6
      // Predicated region
      $region13: #{tpu_custom_call.1} parent=5 // pred_check
        %p220 = pneg %p219
      $region14: #{tpu_custom_call.1} parent=5 // pred_check_branch
        %222 = sbr.rel (%p220) target = $region16
      $region15: #{tpu_custom_call.1} parent=5 // pred_region
        // Predicated region
        $region17: #{tpu_custom_call.1} parent=15 // pred_check
          %p223 = pneg %p70
        $region18: #{tpu_custom_call.1} parent=15 // pred_check_branch
          %225 = sbr.rel (%p223) target = $region20
        $region19: #{tpu_custom_call.1} parent=15 // pred_region
          %s226 = sand.u32 %s60, 1
          %s227 = scalar_lea.sflag [#allocation6], %s226
          %s228 = sand.u32 %s60, 1
          %s229 = smul.addr %s228, 16
          %s230 = scalar_lea.vmem [#allocation5], %s229
          %s231 = smul.u32 4, %s37
          %s233 = ssub.s32 256, 256
          %234 = vsyncadd %s227, %s233
          %s235 = smul.addr %s36, 4
          %s236 = sadd.s32 %s231, %s235
          %s237 = smul.addr %s236, 64
          %s238 = scalar_lea.hbm %s1, %s237
          %s240 = sshll.u32 %s230, 4
          %s241 = int_to_ptr.vmem [resolvable:$true] %s240
          %243 = dma.hbm_to_vmem [thread:$0]  %s238, 256, %s241, %s227
        $region20: #{tpu_custom_call.1} parent=15 // pred_fallthru
          _
        // Predicated region
        $region21: #{tpu_custom_call.1} parent=15 // pred_check
          %p244 = pneg %p114
        $region22: #{tpu_custom_call.1} parent=15 // pred_check_branch
          %246 = sbr.rel (%p244) target = $region24
        $region23: #{tpu_custom_call.1} parent=15 // pred_region
          %s247 = sand.u32 %s29, 1
          %s248 = scalar_lea.sflag [#allocation9], %s247
          %s249 = sand.u32 %s104, 1
          %s250 = smul.addr %s249, 160
          %s251 = scalar_lea.vmem [#allocation8], %s250
          %s252 = sshra.s32 %s38, 7
          %s253 = sand.u32 %s38, 127
          %s254 = sadd.s32 %s252, %s36
          %s255 = smul.u32 %s254, 128
          %s256 = sshra.s32 %s38, 7
          %s257 = sand.u32 %s38, 127
          %s258 = sadd.s32 %s255, %s257
          %s259 = sld [smem:[#allocation4 + %s258]]
          %s260 = smul.u32 4, %s37
          %s262 = ssub.s32 2560, 2560
          %263 = vsyncadd %s248, %s262
          %s264 = smul.addr %s259, 20
          %s265 = sadd.s32 %s260, %s264
          %s266 = smul.addr %s265, 128
          %s267 = scalar_lea.hbm %s2, %s266
          %s268 = sshll.u32 %s251, 4
          %s269 = int_to_ptr.vmem [resolvable:$true] %s268
          %274 = dma.hbm_to_vmem [thread:$0]  %s267, 2560, %s269, %s248, 512, 512, 32
        $region24: #{tpu_custom_call.1} parent=15 // pred_fallthru
          _
        // Predicated region
        $region25: #{tpu_custom_call.1} parent=15 // pred_check
          %p275 = pneg %p142
        $region26: #{tpu_custom_call.1} parent=15 // pred_check_branch
          %277 = sbr.rel (%p275) target = $region28
        $region27: #{tpu_custom_call.1} parent=15 // pred_region
          %s278 = sand.u32 %s29, 1
          %s279 = scalar_lea.sflag [#allocation9], %s278
          %s280 = sand.u32 %s132, 1
          %s281 = smul.addr %s280, 4
          %s282 = scalar_lea.vmem [#allocation10], %s281
          %s284 = ssub.s32 64, 64
          %285 = vsyncadd %s279, %s284
          %s286 = smul.addr %s36, 2
          %s287 = sadd.s32 %s38, %s286
          %s288 = smul.addr %s287, 64
          %s289 = scalar_lea.hbm %s3, %s288
          %s291 = sshll.u32 %s282, 4
          %s292 = int_to_ptr.vmem [resolvable:$true] %s291
          %294 = dma.hbm_to_vmem [thread:$0]  %s289, 64, %s292, %s279
        $region28: #{tpu_custom_call.1} parent=15 // pred_fallthru
          _
        // Predicated region
        $region29: #{tpu_custom_call.1} parent=15 // pred_check
          %p295 = pneg %p170
        $region30: #{tpu_custom_call.1} parent=15 // pred_check_branch
          %297 = sbr.rel (%p295) target = $region32
        $region31: #{tpu_custom_call.1} parent=15 // pred_region
          %s298 = sand.u32 %s160, 1
          %s299 = scalar_lea.sflag [#allocation12], %s298
          %s300 = sand.u32 %s160, 1
          %s301 = smul.addr %s300, 4
          %s302 = scalar_lea.vmem [#allocation11], %s301
          %s304 = ssub.s32 64, 64
          %305 = vsyncadd %s299, %s304
          %s306 = smul.addr %s36, 2
          %s307 = sadd.s32 %s38, %s306
          %s308 = smul.addr %s307, 64
          %s309 = scalar_lea.hbm %s4, %s308
          %s311 = sshll.u32 %s302, 4
          %s312 = int_to_ptr.vmem [resolvable:$true] %s311
          %314 = dma.hbm_to_vmem [thread:$0]  %s309, 64, %s312, %s299
        $region32: #{tpu_custom_call.1} parent=15 // pred_fallthru
          _
      $region16: #{tpu_custom_call.1} parent=5 // pred_fallthru
        _
      %p315 = scmp.le.s32.totalorder 1, %s29
      %p316 = scmp.lt.s32.totalorder %s29, 7
      %p317 = pnand %p315, %p316
      %p318 = pneg %p317
      // Predicated region
      $region33: #{tpu_custom_call.1} parent=5 // pred_check
        _
      $region34: #{tpu_custom_call.1} parent=5 // pred_check_branch
        %320 = sbr.rel (%p317) target = $region36
      $region35: #{tpu_custom_call.1} parent=5 // pred_region
        %s321 = ssub.s32 %s29, 1
        %s322 = sand.u32 %s63, 1
        %s323 = scalar_lea.sflag [#allocation6], %s322
        %s324 = sand.u32 %s63, 1
        %s325 = smul.addr %s324, 16
        %s326 = scalar_lea.vmem [#allocation5], %s325
        // Predicated region
        $region37: #{tpu_custom_call.1} parent=35 // pred_check
          %p327 = pneg %p76
        $region38: #{tpu_custom_call.1} parent=35 // pred_check_branch
          %329 = sbr.rel (%p327) target = $region40
        $region39: #{tpu_custom_call.1} parent=35 // pred_region
          %330 = dma.done %s323, 256
        $region40: #{tpu_custom_call.1} parent=35 // pred_fallthru
          _
        %s331 = sand.u32 %s34, 1
        %s332 = scalar_lea.sflag [#allocation9], %s331
        %s333 = sand.u32 %s107, 1
        %s334 = smul.addr %s333, 160
        %s335 = scalar_lea.vmem [#allocation8], %s334
        // Predicated region
        $region41: #{tpu_custom_call.1} parent=35 // pred_check
          %p336 = pneg %p120
        $region42: #{tpu_custom_call.1} parent=35 // pred_check_branch
          %338 = sbr.rel (%p336) target = $region44
        $region43: #{tpu_custom_call.1} parent=35 // pred_region
          %339 = dma.done %s332, 2560
        $region44: #{tpu_custom_call.1} parent=35 // pred_fallthru
          _
        %s340 = sand.u32 %s34, 1
        %s341 = scalar_lea.sflag [#allocation9], %s340
        %s342 = sand.u32 %s135, 1
        %s343 = smul.addr %s342, 4
        %s344 = scalar_lea.vmem [#allocation10], %s343
        // Predicated region
        $region45: #{tpu_custom_call.1} parent=35 // pred_check
          %p345 = pneg %p148
        $region46: #{tpu_custom_call.1} parent=35 // pred_check_branch
          %347 = sbr.rel (%p345) target = $region48
        $region47: #{tpu_custom_call.1} parent=35 // pred_region
          %348 = dma.done %s341, 64
        $region48: #{tpu_custom_call.1} parent=35 // pred_fallthru
          _
        %s349 = sand.u32 %s163, 1
        %s350 = scalar_lea.sflag [#allocation12], %s349
        %s351 = sand.u32 %s163, 1
        %s352 = smul.addr %s351, 4
        %s353 = scalar_lea.vmem [#allocation11], %s352
        // Predicated region
        $region49: #{tpu_custom_call.1} parent=35 // pred_check
          %p354 = pneg %p176
        $region50: #{tpu_custom_call.1} parent=35 // pred_check_branch
          %356 = sbr.rel (%p354) target = $region52
        $region51: #{tpu_custom_call.1} parent=35 // pred_region
          %357 = dma.done %s350, 64
        $region52: #{tpu_custom_call.1} parent=35 // pred_fallthru
          _
        %s358 = sand.u32 %s63, 1
        %s359 = scalar_lea.sflag [#allocation6], %s358
        %s360 = sand.u32 %s63, 1
        %s361 = smul.addr %s360, 16
        %s362 = scalar_lea.vmem [#allocation5], %s361
        %p363 = pneg %p76
        %p364 = pneg %p73
        %s365 = sand.u32 %s34, 1
        %s366 = scalar_lea.sflag [#allocation9], %s365
        %s367 = sand.u32 %s107, 1
        %s368 = smul.addr %s367, 160
        %s369 = scalar_lea.vmem [#allocation8], %s368
        %p370 = pneg %p120
        %p371 = pneg %p117
        %s372 = sand.u32 %s34, 1
        %s373 = scalar_lea.sflag [#allocation9], %s372
        %s374 = sand.u32 %s135, 1
        %s375 = smul.addr %s374, 4
        %s376 = scalar_lea.vmem [#allocation10], %s375
        %p377 = pneg %p148
        %p378 = pneg %p145
        %s379 = sand.u32 %s163, 1
        %s380 = scalar_lea.sflag [#allocation12], %s379
        %s381 = sand.u32 %s163, 1
        %s382 = smul.addr %s381, 4
        %s383 = scalar_lea.vmem [#allocation11], %s382
        %p384 = pneg %p176
        %p385 = pneg %p173
        %p386 = pneg %p204
        %p387 = pneg %p201
        %s388 = sand.u32 %s191, 1
        %s389 = scalar_lea.sflag [#allocation7], %s388
        %s390 = sand.u32 %s191, 1
        %s391 = smul.addr %s390, 16
        %s392 = scalar_lea.vmem [#allocation13], %s391
        %s393 = smul.u32 4, %s40
        %s394 = sshra.s32 %s41, 7
        %s395 = sand.u32 %s41, 127
        %s396 = sadd.s32 %s394, %s39
        %s397 = smul.u32 %s396, 128
        %s398 = sshra.s32 %s41, 7
        %s399 = sand.u32 %s41, 127
        %s400 = sadd.s32 %s397, %s399
        %s401 = sld [smem:[#allocation4 + %s400]]
        %s402 = smul.u32 4, %s40
        %s403 = smul.u32 4, %s40
        %p404 = scmp.eq.s32.totalorder %s41, 0
        // Predicated region
        $region53: #{tpu_custom_call.1} parent=35 // pred_check
          %p405 = pneg %p404
        $region54: #{tpu_custom_call.1} parent=35 // pred_check_branch
          %407 = sbr.rel (%p405) target = $region56
        $region55: #{tpu_custom_call.1} parent=35 // pred_region
          %v408 = vld [vmem:[%s326] sm:$0xff]
          %v409 = vld [vmem:[%s326 + $0x8] sm:$0xff]
          %410 = vst [vmem:[#allocation2] sm:$0xff] %v408
          %411 = vst [vmem:[#allocation2 + $0x8] sm:$0xff] %v409
        $region56: #{tpu_custom_call.1} parent=35 // pred_fallthru
          _
        %v412 = vld [vmem:[%s335] sm:$0xff]
        %v413 = vld [vmem:[%s335 + $0x8] sm:$0xff]
        %v414 = vld [vmem:[%s335 + $0x10] sm:$0xff]
        %v415 = vld [vmem:[%s335 + $0x18] sm:$0xff]
        %v416 = vld [vmem:[%s335 + $0x20] sm:$0xff]
        %v417 = vld [vmem:[%s335 + $0x28] sm:$0xff]
        %v418 = vld [vmem:[%s335 + $0x30] sm:$0xff]
        %v419 = vld [vmem:[%s335 + $0x38] sm:$0xff]
        %v420 = vld [vmem:[%s335 + $0x40] sm:$0xff]
        %v421 = vld [vmem:[%s335 + $0x48] sm:$0xff]
        %v422 = vld [vmem:[%s335 + $0x50] sm:$0xff]
        %v423 = vld [vmem:[%s335 + $0x58] sm:$0xff]
        %v424 = vld [vmem:[%s335 + $0x60] sm:$0xff]
        %v425 = vld [vmem:[%s335 + $0x68] sm:$0xff]
        %v426 = vld [vmem:[%s335 + $0x70] sm:$0xff]
        %v427 = vld [vmem:[%s335 + $0x78] sm:$0xff]
        %v428 = vld [vmem:[%s335 + $0x80] sm:$0xf]
        %v429 = vld [vmem:[%s335 + $0x88] sm:$0xf]
        %v430 = vld [vmem:[%s335 + $0x90] sm:$0xf]
        %v431 = vld [vmem:[%s335 + $0x98] sm:$0xf]
        %v432 = vld [vmem:[%s344] sm:$0xf]
        %vm433 = vcmask 293888
        %v435 = vsel %vm433, %v432, 0
        %vm437 = vcmask 1043456
        %v439 = vsel %vm437, %v428, 0
        %v442 = vsel %vm437, %v429, 0
        %v445 = vsel %vm437, %v430, 0
        %v448 = vsel %vm437, %v431, 0
        %450 = vmatprep.subr.mxu0 %v413
        %451 = vmatpush1.msra.mxu0 %v412
        %452 = vmatprep.subr.mxu0 %v417
        %453 = vmatpush1.msra.mxu0 %v416
        %454 = vmatprep.subr.mxu0 %v421
        %455 = vmatpush1.msra.mxu0 %v420
        %456 = vmatprep.subr.mxu0 %v425
        %457 = vmatpush1.msra.mxu0 %v424
        %458 = vmatprep.subr.mxu0 %v442
        %459 = vmatpush1.msra.mxu0 %v439
        %460 = vmatprep.subr.mxu0 0.0
        %461 = vmatpush1.msra.mxu0 0.0
        %462 = vmatprep.subr.mxu0 0.0
        %463 = vmatpush1.msra.mxu0 0.0
        %464 = vmatprep.subr.mxu0 0.0
        %465 = vmatpush1.msra.mxu0 0.0
        %466 = vmatprep.subr.mxu0 0.0
        %467 = vmatpush1.msra.mxu0 0.0
        %468 = vmatprep.subr.mxu0 0.0
        %469 = vmatpush1.msra.mxu0 0.0
        %470 = vmatprep.subr.mxu0 0.0
        %471 = vmatpush1.msra.mxu0 0.0
        %472 = vmatprep.subr.mxu0 0.0
        %473 = vmatpush1.msra.mxu0 0.0
        %474 = vmatprep.subr.mxu0 0.0
        %475 = vmatpush1.msra.mxu0 0.0
        %476 = vmatprep.subr.mxu0 0.0
        %477 = vmatpush1.msra.mxu0 0.0
        %478 = vmatprep.subr.mxu0 0.0
        %479 = vmatpush1.msra.mxu0 0.0
        %480 = vmatprep.subr.mxu0 0.0
        %481 = vmatpush1.msra.mxu0 0.0
        %482 = vmatprep.subr.mxu0 0.0
        %483 = vmatpush1.msra.mxu0 0.0
        %484 = vmatprep.subr.mxu0 0.0
        %485 = vmatpush1.msra.mxu0 0.0
        %486 = vmatprep.subr.mxu0 0.0
        %487 = vmatpush1.msra.mxu0 0.0
        %488 = vmatprep.subr.mxu0 0.0
        %489 = vmatpush1.msra.mxu0 0.0
        %490 = vmatprep.subr.mxu0 0.0
        %491 = vmatpush1.msra.mxu0 0.0
        %492 = vmatprep.subr.mxu0 0.0
        %493 = vmatpush1.msra.mxu0 0.0
        %494 = vmatprep.subr.mxu0 0.0
        %495 = vmatpush1.msra.mxu0 0.0
        %496 = vmatprep.subr.mxu0 0.0
        %497 = vmatpush1.msra.mxu0 0.0
        %498 = vmatprep.subr.mxu0 0.0
        %499 = vmatpush1.msra.mxu0 0.0
        %500 = vmatprep.subr.mxu0 0.0
        %501 = vmatpush1.msra.mxu0 0.0
        %502 = vmatprep.subr.mxu0 0.0
        %503 = vmatpush1.msra.mxu0 0.0
        %504 = vmatprep.subr.mxu0 0.0
        %505 = vmatpush1.msra.mxu0 0.0
        %506 = vmatprep.subr.mxu0 0.0
        %507 = vmatpush1.msra.mxu0 0.0
        %508 = vmatprep.subr.mxu0 0.0
        %509 = vmatpush1.msra.mxu0 0.0
        %510 = vmatprep.subr.mxu0 0.0
        %511 = vmatpush1.msra.mxu0 0.0
        %512 = vmatprep.subr.mxu0 0.0
        %513 = vmatpush1.msra.mxu0 0.0
        %514 = vmatprep.mubr.f32.mxu0 0.0
        %515 = vmatmul.mubr.f32.gmra.mrb[0].mxu0 %v435
        %v516 = vpop.f32.mrb[0].mxu0
        %v517 = vadd.f32 0.0, %v516
        %v518 = vpop.f32.mrb[0].mxu0
        %v519 = vadd.f32 0.0, %v518
        %520 = vdwg.mxu0
        %521 = vmatprep.subr.mxu0 %v415
        %522 = vmatpush1.msra.mxu0 %v414
        %523 = vmatprep.subr.mxu0 %v419
        %524 = vmatpush1.msra.mxu0 %v418
        %525 = vmatprep.subr.mxu0 %v423
        %526 = vmatpush1.msra.mxu0 %v422
        %527 = vmatprep.subr.mxu0 %v427
        %528 = vmatpush1.msra.mxu0 %v426
        %529 = vmatprep.subr.mxu0 %v448
        %530 = vmatpush1.msra.mxu0 %v445
        %531 = vmatprep.subr.mxu0 0.0
        %532 = vmatpush1.msra.mxu0 0.0
        %533 = vmatprep.subr.mxu0 0.0
        %534 = vmatpush1.msra.mxu0 0.0
        %535 = vmatprep.subr.mxu0 0.0
        %536 = vmatpush1.msra.mxu0 0.0
        %537 = vmatprep.subr.mxu0 0.0
        %538 = vmatpush1.msra.mxu0 0.0
        %539 = vmatprep.subr.mxu0 0.0
        %540 = vmatpush1.msra.mxu0 0.0
        %541 = vmatprep.subr.mxu0 0.0
        %542 = vmatpush1.msra.mxu0 0.0
        %543 = vmatprep.subr.mxu0 0.0
        %544 = vmatpush1.msra.mxu0 0.0
        %545 = vmatprep.subr.mxu0 0.0
        %546 = vmatpush1.msra.mxu0 0.0
        %547 = vmatprep.subr.mxu0 0.0
        %548 = vmatpush1.msra.mxu0 0.0
        %549 = vmatprep.subr.mxu0 0.0
        %550 = vmatpush1.msra.mxu0 0.0
        %551 = vmatprep.subr.mxu0 0.0
        %552 = vmatpush1.msra.mxu0 0.0
        %553 = vmatprep.subr.mxu0 0.0
        %554 = vmatpush1.msra.mxu0 0.0
        %555 = vmatprep.subr.mxu0 0.0
        %556 = vmatpush1.msra.mxu0 0.0
        %557 = vmatprep.subr.mxu0 0.0
        %558 = vmatpush1.msra.mxu0 0.0
        %559 = vmatprep.subr.mxu0 0.0
        %560 = vmatpush1.msra.mxu0 0.0
        %561 = vmatprep.subr.mxu0 0.0
        %562 = vmatpush1.msra.mxu0 0.0
        %563 = vmatprep.subr.mxu0 0.0
        %564 = vmatpush1.msra.mxu0 0.0
        %565 = vmatprep.subr.mxu0 0.0
        %566 = vmatpush1.msra.mxu0 0.0
        %567 = vmatprep.subr.mxu0 0.0
        %568 = vmatpush1.msra.mxu0 0.0
        %569 = vmatprep.subr.mxu0 0.0
        %570 = vmatpush1.msra.mxu0 0.0
        %571 = vmatprep.subr.mxu0 0.0
        %572 = vmatpush1.msra.mxu0 0.0
        %573 = vmatprep.subr.mxu0 0.0
        %574 = vmatpush1.msra.mxu0 0.0
        %575 = vmatprep.subr.mxu0 0.0
        %576 = vmatpush1.msra.mxu0 0.0
        %577 = vmatprep.subr.mxu0 0.0
        %578 = vmatpush1.msra.mxu0 0.0
        %579 = vmatprep.subr.mxu0 0.0
        %580 = vmatpush1.msra.mxu0 0.0
        %581 = vmatprep.subr.mxu0 0.0
        %582 = vmatpush1.msra.mxu0 0.0
        %583 = vmatprep.subr.mxu0 0.0
        %584 = vmatpush1.msra.mxu0 0.0
        %585 = vmatprep.mubr.f32.mxu0 0.0
        %586 = vmatmul.mubr.f32.gmra.mrb[0].mxu0 %v435
        %v587 = vpop.f32.mrb[0].mxu0
        %v588 = vadd.f32 0.0, %v587
        %v589 = vpop.f32.mrb[0].mxu0
        %v590 = vadd.f32 0.0, %v589
        %591 = vdwg.mxu0
        %v592 = vld [vmem:[%s353] sm:$0xf]
        %v594 = vsel %vm433, %v592, 0
        %596 = vmatprep.subr.mxu0 %v413
        %597 = vmatpush1.msra.mxu0 %v412
        %598 = vmatprep.subr.mxu0 %v417
        %599 = vmatpush1.msra.mxu0 %v416
        %600 = vmatprep.subr.mxu0 %v421
        %601 = vmatpush1.msra.mxu0 %v420
        %602 = vmatprep.subr.mxu0 %v425
        %603 = vmatpush1.msra.mxu0 %v424
        %604 = vmatprep.subr.mxu0 %v442
        %605 = vmatpush1.msra.mxu0 %v439
        %606 = vmatprep.subr.mxu0 0.0
        %607 = vmatpush1.msra.mxu0 0.0
        %608 = vmatprep.subr.mxu0 0.0
        %609 = vmatpush1.msra.mxu0 0.0
        %610 = vmatprep.subr.mxu0 0.0
        %611 = vmatpush1.msra.mxu0 0.0
        %612 = vmatprep.subr.mxu0 0.0
        %613 = vmatpush1.msra.mxu0 0.0
        %614 = vmatprep.subr.mxu0 0.0
        %615 = vmatpush1.msra.mxu0 0.0
        %616 = vmatprep.subr.mxu0 0.0
        %617 = vmatpush1.msra.mxu0 0.0
        %618 = vmatprep.subr.mxu0 0.0
        %619 = vmatpush1.msra.mxu0 0.0
        %620 = vmatprep.subr.mxu0 0.0
        %621 = vmatpush1.msra.mxu0 0.0
        %622 = vmatprep.subr.mxu0 0.0
        %623 = vmatpush1.msra.mxu0 0.0
        %624 = vmatprep.subr.mxu0 0.0
        %625 = vmatpush1.msra.mxu0 0.0
        %626 = vmatprep.subr.mxu0 0.0
        %627 = vmatpush1.msra.mxu0 0.0
        %628 = vmatprep.subr.mxu0 0.0
        %629 = vmatpush1.msra.mxu0 0.0
        %630 = vmatprep.subr.mxu0 0.0
        %631 = vmatpush1.msra.mxu0 0.0
        %632 = vmatprep.subr.mxu0 0.0
        %633 = vmatpush1.msra.mxu0 0.0
        %634 = vmatprep.subr.mxu0 0.0
        %635 = vmatpush1.msra.mxu0 0.0
        %636 = vmatprep.subr.mxu0 0.0
        %637 = vmatpush1.msra.mxu0 0.0
        %638 = vmatprep.subr.mxu0 0.0
        %639 = vmatpush1.msra.mxu0 0.0
        %640 = vmatprep.subr.mxu0 0.0
        %641 = vmatpush1.msra.mxu0 0.0
        %642 = vmatprep.subr.mxu0 0.0
        %643 = vmatpush1.msra.mxu0 0.0
        %644 = vmatprep.subr.mxu0 0.0
        %645 = vmatpush1.msra.mxu0 0.0
        %646 = vmatprep.subr.mxu0 0.0
        %647 = vmatpush1.msra.mxu0 0.0
        %648 = vmatprep.subr.mxu0 0.0
        %649 = vmatpush1.msra.mxu0 0.0
        %650 = vmatprep.subr.mxu0 0.0
        %651 = vmatpush1.msra.mxu0 0.0
        %652 = vmatprep.subr.mxu0 0.0
        %653 = vmatpush1.msra.mxu0 0.0
        %654 = vmatprep.subr.mxu0 0.0
        %655 = vmatpush1.msra.mxu0 0.0
        %656 = vmatprep.subr.mxu0 0.0
        %657 = vmatpush1.msra.mxu0 0.0
        %658 = vmatprep.subr.mxu0 0.0
        %659 = vmatpush1.msra.mxu0 0.0
        %660 = vmatprep.mubr.f32.mxu0 0.0
        %661 = vmatmul.mubr.f32.gmra.mrb[0].mxu0 %v594
        %v662 = vpop.f32.mrb[0].mxu0
        %v663 = vadd.f32 0.0, %v662
        %v664 = vpop.f32.mrb[0].mxu0
        %v665 = vadd.f32 0.0, %v664
        %666 = vdwg.mxu0
        %667 = vmatprep.subr.mxu0 %v415
        %668 = vmatpush1.msra.mxu0 %v414
        %669 = vmatprep.subr.mxu0 %v419
        %670 = vmatpush1.msra.mxu0 %v418
        %671 = vmatprep.subr.mxu0 %v423
        %672 = vmatpush1.msra.mxu0 %v422
        %673 = vmatprep.subr.mxu0 %v427
        %674 = vmatpush1.msra.mxu0 %v426
        %675 = vmatprep.subr.mxu0 %v448
        %676 = vmatpush1.msra.mxu0 %v445
        %677 = vmatprep.subr.mxu0 0.0
        %678 = vmatpush1.msra.mxu0 0.0
        %679 = vmatprep.subr.mxu0 0.0
        %680 = vmatpush1.msra.mxu0 0.0
        %681 = vmatprep.subr.mxu0 0.0
        %682 = vmatpush1.msra.mxu0 0.0
        %683 = vmatprep.subr.mxu0 0.0
        %684 = vmatpush1.msra.mxu0 0.0
        %685 = vmatprep.subr.mxu0 0.0
        %686 = vmatpush1.msra.mxu0 0.0
        %687 = vmatprep.subr.mxu0 0.0
        %688 = vmatpush1.msra.mxu0 0.0
        %689 = vmatprep.subr.mxu0 0.0
        %690 = vmatpush1.msra.mxu0 0.0
        %691 = vmatprep.subr.mxu0 0.0
        %692 = vmatpush1.msra.mxu0 0.0
        %693 = vmatprep.subr.mxu0 0.0
        %694 = vmatpush1.msra.mxu0 0.0
        %695 = vmatprep.subr.mxu0 0.0
        %696 = vmatpush1.msra.mxu0 0.0
        %697 = vmatprep.subr.mxu0 0.0
        %698 = vmatpush1.msra.mxu0 0.0
        %699 = vmatprep.subr.mxu0 0.0
        %700 = vmatpush1.msra.mxu0 0.0
        %701 = vmatprep.subr.mxu0 0.0
        %702 = vmatpush1.msra.mxu0 0.0
        %703 = vmatprep.subr.mxu0 0.0
        %704 = vmatpush1.msra.mxu0 0.0
        %705 = vmatprep.subr.mxu0 0.0
        %706 = vmatpush1.msra.mxu0 0.0
        %707 = vmatprep.subr.mxu0 0.0
        %708 = vmatpush1.msra.mxu0 0.0
        %709 = vmatprep.subr.mxu0 0.0
        %710 = vmatpush1.msra.mxu0 0.0
        %711 = vmatprep.subr.mxu0 0.0
        %712 = vmatpush1.msra.mxu0 0.0
        %713 = vmatprep.subr.mxu0 0.0
        %714 = vmatpush1.msra.mxu0 0.0
        %715 = vmatprep.subr.mxu0 0.0
        %716 = vmatpush1.msra.mxu0 0.0
        %717 = vmatprep.subr.mxu0 0.0
        %718 = vmatpush1.msra.mxu0 0.0
        %719 = vmatprep.subr.mxu0 0.0
        %720 = vmatpush1.msra.mxu0 0.0
        %721 = vmatprep.subr.mxu0 0.0
        %722 = vmatpush1.msra.mxu0 0.0
        %723 = vmatprep.subr.mxu0 0.0
        %724 = vmatpush1.msra.mxu0 0.0
        %725 = vmatprep.subr.mxu0 0.0
        %726 = vmatpush1.msra.mxu0 0.0
        %727 = vmatprep.subr.mxu0 0.0
        %728 = vmatpush1.msra.mxu0 0.0
        %729 = vmatprep.subr.mxu0 0.0
        %730 = vmatpush1.msra.mxu0 0.0
        %731 = vmatprep.mubr.f32.mxu0 0.0
        %732 = vmatmul.mubr.f32.gmra.mrb[0].mxu0 %v594
        %v733 = vpop.f32.mrb[0].mxu0
        %v734 = vadd.f32 0.0, %v733
        %v735 = vpop.f32.mrb[0].mxu0
        %v736 = vadd.f32 0.0, %v735
        %737 = vdwg.mxu0
        %v738 = vsub.f32 0.0, %v517
        %v739 = vsub.f32 0.0, %v519
        %v740 = vsub.f32 0.0, %v588
        %v741 = vsub.f32 0.0, %v590
        %v742 = vmul.f32 %v738, 1.442695
        %v743 = vpow.pop %v742
        %v744 = vmul.f32 %v739, 1.442695
        %v745 = vpow.pop %v744
        %v746 = vmul.f32 %v740, 1.442695
        %v747 = vpow.pop %v746
        %v748 = vmul.f32 %v741, 1.442695
        %v749 = vpow.pop %v748
        %v750 = vadd.f32 %v743, 1.0
        %v751 = vadd.f32 %v745, 1.0
        %v752 = vadd.f32 %v747, 1.0
        %v753 = vadd.f32 %v749, 1.0
        %v754 = vrcp.pop %v750
        %v755 = vrcp.pop %v751
        %v756 = vrcp.pop %v752
        %v757 = vrcp.pop %v753
        %v758 = vld [vmem:[#allocation2] sm:$0xff]
        %v759 = vld [vmem:[#allocation2 + $0x8] sm:$0xff]
        %v760 = vmul.f32 %v754, %v663
        %v761 = vmul.f32 %v755, %v665
        %v762 = vmul.f32 %v756, %v734
        %v763 = vmul.f32 %v757, %v736
        %v768 = vcombine.low %v760, %v761
        %v769 = vcombine.low %v762, %v763
        %v772 = vadd.f32 %v758, %v768
        %v773 = vadd.f32 %v759, %v769
        %774 = vst [vmem:[#allocation2] sm:$0xff] %v772
        %775 = vst [vmem:[#allocation2 + $0x8] sm:$0xff] %v773
        %p776 = scmp.eq.s32.totalorder %s41, 1
        // Predicated region
        $region57: #{tpu_custom_call.1} parent=35 // pred_check
          %p777 = pneg %p776
        $region58: #{tpu_custom_call.1} parent=35 // pred_check_branch
          %779 = sbr.rel (%p777) target = $region60
        $region59: #{tpu_custom_call.1} parent=35 // pred_region
          %v780 = vld [vmem:[#allocation2] sm:$0xff]
          %v781 = vld [vmem:[#allocation2 + $0x8] sm:$0xff]
          %782 = vst [vmem:[%s392] sm:$0xff] %v780
          %783 = vst [vmem:[%s392 + $0x8] sm:$0xff] %v781
        $region60: #{tpu_custom_call.1} parent=35 // pred_fallthru
          _
        %s784 = sand.u32 %s191, 1
        %s785 = scalar_lea.sflag [#allocation7], %s784
        %s786 = sand.u32 %s191, 1
        %s787 = smul.addr %s786, 16
        %s788 = scalar_lea.vmem [#allocation13], %s787
        // Predicated region
        $region61: #{tpu_custom_call.1} parent=35 // pred_check
          %p789 = pneg %p201
        $region62: #{tpu_custom_call.1} parent=35 // pred_check_branch
          %791 = sbr.rel (%p789) target = $region64
        $region63: #{tpu_custom_call.1} parent=35 // pred_region
          %s792 = smul.u32 4, %s40
          %s794 = ssub.s32 256, 256
          %795 = vsyncadd %s785, %s794
          %s796 = smul.addr %s39, 4
          %s797 = sadd.s32 %s792, %s796
          %s798 = smul.addr %s797, 64
          %s799 = scalar_lea.hbm %s5, %s798
          %s801 = sshll.u32 %s788, 4
          %s802 = int_to_ptr.vmem [resolvable:$true] %s801
          %804 = dma.vmem_to_hbm [thread:$0]  %s802, 256, %s799, %s785
        $region64: #{tpu_custom_call.1} parent=35 // pred_fallthru
          _
      $region36: #{tpu_custom_call.1} parent=5 // pred_fallthru
        _
      %p805 = scmp.le.s32.totalorder 2, %s29
      // Predicated region
      $region65: #{tpu_custom_call.1} parent=5 // pred_check
        %p806 = pneg %p805
      $region66: #{tpu_custom_call.1} parent=5 // pred_check_branch
        %808 = sbr.rel (%p806) target = $region68
      $region67: #{tpu_custom_call.1} parent=5 // pred_region
        %s809 = ssub.s32 %s29, 2
        // Predicated region
        $region69: #{tpu_custom_call.1} parent=67 // pred_check
          %p810 = pneg %p207
        $region70: #{tpu_custom_call.1} parent=67 // pred_check_branch
          %812 = sbr.rel (%p810) target = $region72
        $region71: #{tpu_custom_call.1} parent=67 // pred_region
          %s813 = sand.u32 %s192, 1
          %s814 = scalar_lea.sflag [#allocation7], %s813
          %s815 = sand.u32 %s192, 1
          %s816 = smul.addr %s815, 16
          %s817 = scalar_lea.vmem [#allocation13], %s816
          %818 = dma.done %s814, 256
        $region72: #{tpu_custom_call.1} parent=67 // pred_fallthru
          _
      $region68: #{tpu_custom_call.1} parent=5 // pred_fallthru
        _
    $region6: #{tpu_custom_call.1} parent=1 // loop_footer
      %s33 = sadd.s32 1, %s29
    $region7: #{tpu_custom_call.1} parent=1 // loop_footer_branch
      %28 = sbr.rel target = $region3
    $region8: #{tpu_custom_call.1} parent=1 // loop_exit
      _
    %819 = vsyncpa [#allocation6], 1
    %s820 = scalar_lea.sflag [#allocation6], 1
    %821 = vsyncpa %s820, 1
    %822 = vsyncpa [#allocation9], 1
    %s823 = scalar_lea.sflag [#allocation9], 1
    %824 = vsyncpa %s823, 1
    %825 = vsyncpa [#allocation12], 1
    %s826 = scalar_lea.sflag [#allocation12], 1
    %827 = vsyncpa %s826, 1
    %828 = vsyncpa [#allocation7], 1
    %s829 = scalar_lea.sflag [#allocation7], 1
    %830 = vsyncpa %s829, 1

</llo_original>
